<compile_context>
chip_gen: v5e
topology: v5e:2x2
jax: 0.10.0
libtpu: 0.0.40
codegen_flags: <defaults>
</compile_context>

<pallas_src>
import jax
import jax.numpy as jnp
from jax import lax
from jax.experimental import pallas as pl
from jax.experimental.pallas import tpu as pltpu


# ---------------------------------------------------------------------------
# Tiling / VMEM helpers
# ---------------------------------------------------------------------------
def _pick_tile(dim: int, candidates) -> int:
    """Largest candidate that evenly divides `dim`, else the full extent."""
    for c in candidates:
        if c <= dim and dim % c == 0:
            return c
    return dim   # TODO(synk): masked edge tiles (pl.cdiv grids) for truly awkward dims.


def _tile_candidates(dim: int, cands=(1024, 512, 256, 128, 64, 32, 16, 8)):
    divs = [c for c in cands if c <= dim and dim % c == 0]
    return divs if divs else [dim]


def _default_vmem_limit() -> int:
    """Per-generation VMEM limit: ~96 MiB on v5e/v6e (128 MiB phys), ~48 MiB on v7x."""
    try:
        cap = int(pltpu.get_tpu_info().vmem_capacity_bytes)
    except Exception:
        cap = 64 * 1024 * 1024
    return max(32 * 1024 * 1024, (cap * 3) // 4)


def _choose_lowrank_row_tile(M, H_in, H_out, R, x_itemsize, y_itemsize, budget):
    """Largest row tile for which the factored forward fits in `budget` VMEM bytes."""
    resident = 2 * R * H_in + 2 * H_out * R + 4 * R        # bf16 Vt + bf16 U + f32 sz (1-buffered)
    for tmy in _tile_candidates(M):
        working = (resident
                   + 2 * tmy * H_in * x_itemsize           # x tile, double-buffered
                   + 2 * tmy * H_out * y_itemsize          # y tile, double-buffered
                   + 4 * tmy * R                           # f32 t intermediate
                   + 2 * tmy * H_in)                       # bf16 copy of x tile
        if working <= budget:
            return tmy
    return None


# ---------------------------------------------------------------------------
# Kernel 1: weight patch.  W'[i, j] += (U[i, k] * sz[k]) @ Vt[k, j]   (k = R chunks)
# ---------------------------------------------------------------------------
def _svf_patch_kernel(u_ref, vt_ref, sz_ref, w_ref, acc_ref):
    k = pl.program_id(2)

    @pl.when(k == 0)
    def _():
        acc_ref[...] = jnp.zeros_like(acc_ref)

    # Scale the rank-chunk of U in f32, then feed the MXU bf16 operands.
    u_scaled = (u_ref[...].astype(jnp.float32) * sz_ref[...]).astype(jnp.bfloat16)
    acc_ref[...] += jnp.dot(u_scaled, vt_ref[...],
                            preferred_element_type=jnp.float32)

    @pl.when(k == pl.num_programs(2) - 1)
    def _():
        w_ref[...] = acc_ref[...].astype(w_ref.dtype)


def _svf_patch_kernel_inplace(u_ref, vt_ref, sz_ref, w_base_ref, w_ref, acc_ref):
    del w_base_ref   # aliased in-place patch target (raw HBM ref); fully overwritten
    _svf_patch_kernel(u_ref, vt_ref, sz_ref, w_ref, acc_ref)


# ---------------------------------------------------------------------------
# Kernel 2a: factored forward (R << H).  y = ((x @ Vt^T) * sz) @ U^T
# ---------------------------------------------------------------------------
def _svf_lowrank_forward_kernel(x_ref, vt_ref, u_ref, sz_ref, y_ref):
    x_bf = x_ref[...].astype(jnp.bfloat16)
    # t = x @ Vt^T : contract the last dims (no explicit transpose)  -> (tmy, R), f32
    t = lax.dot_general(x_bf, vt_ref[...],
                        dimension_numbers=(((1,), (1,)), ((), ())),
                        preferred_element_type=jnp.float32)
    t = (t * sz_ref[...]).astype(jnp.bfloat16)
    # y = t @ U^T : contract the last dims -> (tmy, H_out)
    y_ref[...] = lax.dot_general(t, u_ref[...],
                                 dimension_numbers=(((1,), (1,)), ((), ())),
                                 preferred_element_type=jnp.float32
                                 ).astype(y_ref.dtype)
    # TODO(synk): on v5e, verify via pl.lower_as_mlir that the transposed-rhs contraction
    # does not fall back to an XLU transpose; if so pre-transpose the frozen factors once.


# ---------------------------------------------------------------------------
# Kernel 2b: dense forward (full-rank SVF).  y = x @ W'^T from the patched weight.
# ---------------------------------------------------------------------------
def _svf_dense_forward_kernel(x_ref, w_ref, y_ref, acc_ref):
    k = pl.program_id(2)

    @pl.when(k == 0)
    def _():
        acc_ref[...] = jnp.zeros_like(acc_ref)

    acc_ref[...] += lax.dot_general(
        x_ref[...].astype(jnp.bfloat16), w_ref[...].astype(jnp.bfloat16),
        dimension_numbers=(((1,), (1,)), ((), ())),
        preferred_element_type=jnp.float32)

    @pl.when(k == pl.num_programs(2) - 1)
    def _():
        y_ref[...] = acc_ref[...].astype(y_ref.dtype)


# ---------------------------------------------------------------------------
# Wrapper: patch_weights() + patched-linear forward()
# ---------------------------------------------------------------------------
def svf_forward(x, U, S, z, Vt, w_base=None, *, vmem_limit_bytes=None):
    """Patch W' = U diag(S*z) Vt (in place of `w_base` when provided) and run the
    patched linear forward y = x @ W'^T.

    x : [B, T, H_in];  U : [H_out, R];  S, z : [R];  Vt : [R, H_in]
    w_base : optional existing frozen [H_out, H_in] weight buffer to overwrite in place.
    Returns (W_prime [H_out, H_in], y [B, T, H_out]).
    """
    B, T, H_in = x.shape
    H_out, R = U.shape
    M = B * T

    if vmem_limit_bytes is None:
        vmem_limit_bytes = _default_vmem_limit()

    x2d = x.reshape(M, H_in)
    # Combined singular scaling (tiny O(R) op; per-rank scaling still happens in-kernel).
    sz = (S.astype(jnp.float32) * z.astype(jnp.float32)).reshape(1, R)
    # Frozen factors feed the MXU in bf16 (f32 accumulation); in a real SVF setup they
    # would already be stored in bf16.
    u_bf = U.astype(jnp.bfloat16)
    vt_bf = Vt.astype(jnp.bfloat16)

    w_dtype = w_base.dtype if w_base is not None else jnp.float32
    w_itemsize = w_base.dtype.itemsize if w_base is not None else 4
    y_dtype = x.dtype

    # ----- Kernel 1: weight patch, tiled (H_out, H_in, R-reduction) ------------------
    tm = _pick_tile(H_out, (1024, 512, 256, 128, 64, 32, 16, 8))
    tn = _pick_tile(H_in, (512, 256, 128, 64, 32, 16, 8))
    tk = _pick_tile(R, (512, 256, 128, 64, 32, 16, 8))

    patch_in_specs = [
        pl.BlockSpec((tm, tk), lambda i, j, k: (i, k)),      # U rank-chunk
        pl.BlockSpec((tk, tn), lambda i, j, k: (k, j)),      # Vt rank-chunk
        pl.BlockSpec((1, tk), lambda i, j, k: (0, k)),       # sz rank-chunk
    ]
    patch_inputs = (u_bf, vt_bf, sz)
    patch_kernel = _svf_patch_kernel
    io_aliases = {}
    if w_base is not None:
        # In-place patch of the existing frozen buffer (param_ref.data.copy_(new_w)).
        patch_in_specs.append(pl.BlockSpec(memory_space=pl.ANY))
        patch_inputs = patch_inputs + (w_base,)
        patch_kernel = _svf_patch_kernel_inplace
        io_aliases = {3: 0}

    patch_cost = pl.CostEstimate(
        flops=2 * H_out * H_in * R + H_out * R,
        transcendentals=0,
        bytes_accessed=(2 * H_out * R * (H_in // tn)         # U re-reads across j
                        + 2 * R * H_in * (H_out // tm)       # Vt re-reads across i
                        + w_itemsize * H_out * H_in),
    )

    w_prime = pl.pallas_call(
        patch_kernel,
        out_shape=jax.ShapeDtypeStruct((H_out, H_in), w_dtype),
        grid=(H_out // tm, H_in // tn, R // tk),
        in_specs=patch_in_specs,
        out_specs=pl.BlockSpec((tm, tn), lambda i, j, k: (i, j)),
        scratch_shapes=[pltpu.VMEM((tm, tn), jnp.float32)],
        input_output_aliases=io_aliases,
        compiler_params=pltpu.CompilerParams(
            dimension_semantics=("parallel", "parallel", "arbitrary"),
            vmem_limit_bytes=vmem_limit_bytes),
        cost_estimate=patch_cost,
    )(*patch_inputs)

    # ----- Kernel 2: forward; dispatch on R (factored vs. reuse the patched W') ------
    use_lowrank = R * (H_in + H_out) < H_in * H_out          # fewer FLOPs than dense
    tmy_lr = None
    if use_lowrank:
        tmy_lr = _choose_lowrank_row_tile(M, H_in, H_out, R,
                                          x2d.dtype.itemsize, x2d.dtype.itemsize,
                                          budget=vmem_limit_bytes // 2)
        use_lowrank = tmy_lr is not None                     # must also fit in VMEM

    if use_lowrank:
        lr_cost = pl.CostEstimate(
            flops=2 * M * R * (H_in + H_out) + M * R,
            transcendentals=0,
            bytes_accessed=(x2d.dtype.itemsize * M * H_in + 2 * R * H_in
                            + 2 * H_out * R + x2d.dtype.itemsize * M * H_out),
        )
        y2d = pl.pallas_call(
            _svf_lowrank_forward_kernel,
            out_shape=jax.ShapeDtypeStruct((M, H_out), y_dtype),
            grid=(M // tmy_lr,),
            in_specs=[
                pl.BlockSpec((tmy_lr, H_in), lambda i: (i, 0)),         # x row-tile
                pl.BlockSpec((R, H_in), lambda i: (0, 0),
                             pipeline_mode=pl.Buffered(1)),             # Vt (resident)
                pl.BlockSpec((H_out, R), lambda i: (0, 0),
                             pipeline_mode=pl.Buffered(1)),             # U  (resident)
                pl.BlockSpec((1, R), lambda i: (0, 0),
                             pipeline_mode=pl.Buffered(1)),             # sz
            ],
            out_specs=pl.BlockSpec((tmy_lr, H_out), lambda i: (i, 0)),
            compiler_params=pltpu.CompilerParams(
                dimension_semantics=("parallel",),
                vmem_limit_bytes=vmem_limit_bytes),
            cost_estimate=lr_cost,
        )(x2d, vt_bf, u_bf, sz)
    else:
        tmy = _pick_tile(M, (512, 256, 128, 64, 32, 16, 8))
        tny = _pick_tile(H_out, (512, 256, 128, 64, 32, 16, 8))
        tky = _pick_tile(H_in, (512, 256, 128, 64, 32, 16, 8))
        dense_cost = pl.CostEstimate(
            flops=2 * M * H_in * H_out,
            transcendentals=0,
            bytes_accessed=(x2d.dtype.itemsize * M * H_in * (H_out // tny)
                            + w_itemsize * H_out * H_in * (M // tmy)
                            + x2d.dtype.itemsize * M * H_out),
        )
        y2d = pl.pallas_call(
            _svf_dense_forward_kernel,
            out_shape=jax.ShapeDtypeStruct((M, H_out), y_dtype),
            grid=(M // tmy, H_out // tny, H_in // tky),
            in_specs=[
                pl.BlockSpec((tmy, tky), lambda i, j, k: (i, k)),       # x tile
                pl.BlockSpec((tny, tky), lambda i, j, k: (j, k)),       # W' tile
            ],
            out_specs=pl.BlockSpec((tmy, tny), lambda i, j, k: (i, j)),
            scratch_shapes=[pltpu.VMEM((tmy, tny), jnp.float32)],
            compiler_params=pltpu.CompilerParams(
                dimension_semantics=("parallel", "parallel", "arbitrary"),
                vmem_limit_bytes=vmem_limit_bytes),
            cost_estimate=dense_cost,
        )(x2d, w_prime)

    return w_prime, y2d.reshape(B, T, H_out)


# ---------------------------------------------------------------------------
# Demo / correctness check
# ---------------------------------------------------------------------------
if __name__ == "__main__":
    def make_case(key, B, T, H_in, H_out, R):
        k_x, k_u, k_s, k_vt, k_z = jax.random.split(key, 5)
        x = jax.random.normal(k_x, (B, T, H_in), dtype=jnp.float32)
        # Deterministic synthetic SVD components (synthetic kernel, not a checkpoint).
        U = jax.random.normal(k_u, (H_out, R), dtype=jnp.float32) / jnp.sqrt(H_out)
        S = jnp.abs(jax.random.normal(k_s, (R,), dtype=jnp.float32)) + 0.1
        Vt = jax.random.normal(k_vt, (R, H_in), dtype=jnp.float32) / jnp.sqrt(H_in)
        # z init: truncnorm.rvs(-2, 2, loc=0.05, scale=0.01, size=R)
        z = jax.random.truncated_normal(k_z, -2.0, 2.0, (R,), dtype=jnp.float32)
        z = z * 0.01 + 0.05
        return x, U, S, z, Vt

    fwd = jax.jit(svf_forward)
    key = jax.random.PRNGKey(0)
    k1, k2 = jax.random.split(key)
    ok = True

    # Case 1: low-rank adapter (R << H) -> factored forward path, no existing buffer.
    B, T, H_in, H_out, R = 2, 8, 32, 32, 8
    x, U, S, z, Vt = make_case(k1, B, T, H_in, H_out, R)
    w_prime, y = fwd(x, U, S, z, Vt)
    jax.block_until_ready((w_prime, y))
    w_ref = U @ jnp.diag(S * z) @ Vt
    y_ref = (x.reshape(B * T, H_in) @ w_ref.T).reshape(B, T, H_out)
    ok &= bool(jnp.allclose(w_prime, w_ref, atol=1e-2, rtol=1e-2))
    ok &= bool(jnp.allclose(y, y_ref, atol=1e-2, rtol=1e-2))

    # Case 2: full-rank SVF (R == H) with a frozen weight buffer patched in place;
    # forward reuses the already-patched W' (dense path).
    B, T, H_in, H_out, R = 2, 8, 32, 32, 32
    x, U, S, z, Vt = make_case(k2, B, T, H_in, H_out, R)
    w_base = jnp.zeros((H_out, H_in), dtype=jnp.float32)
    w_prime, y = fwd(x, U, S, z, Vt, w_base)
    jax.block_until_ready((w_prime, y))
    w_ref = U @ jnp.diag(S * z) @ Vt
    y_ref = (x.reshape(B * T, H_in) @ w_ref.T).reshape(B, T, H_out)
    ok &= bool(jnp.allclose(w_prime, w_ref, atol=1e-2, rtol=1e-2))
    ok &= bool(jnp.allclose(y, y_ref, atol=1e-2, rtol=1e-2))

    assert ok
    # TODO(synk): the real SVFWrapper.forward delegates to an arbitrary HuggingFace
    # PreTrainedModel; only the weight patching + one patched linear layer forward
    # is implemented here.
    print("KERNEL_OK")
</pallas_src>

<mosaic_0001>
module attributes {stable_mosaic.version = 11 : i64} {
  func.func @_svf_patch_kernel(%arg0: i32, %arg1: i32, %arg2: i32, %arg3: memref<32x8xbf16, #tpu.memory_space<vmem>>, %arg4: memref<8x32xbf16, #tpu.memory_space<vmem>>, %arg5: memref<1x8xf32, #tpu.memory_space<vmem>>, %arg6: memref<32x32xf32, #tpu.memory_space<vmem>>, %arg7: memref<32x32xf32, #tpu.memory_space<vmem>>) attributes {dimension_semantics = [#tpu.dimension_semantics<parallel>, #tpu.dimension_semantics<parallel>, #tpu.dimension_semantics<arbitrary>], iteration_bounds = array<i64: 1, 1, 1>, scalar_prefetch = 0 : i64, scratch_operands = 1 : i64, tpu.core_type = #tpu.core_type<tc>, window_params = [{transform_indices = @transform_0, window_bounds = array<i64: 32, 8>}, {transform_indices = @transform_1, window_bounds = array<i64: 8, 32>}, {transform_indices = @transform_2, window_bounds = array<i64: 1, 8>}, {transform_indices = @transform_3, window_bounds = array<i64: 32, 32>}]} {
    %c0_i32 = arith.constant 0 : i32
    %0 = arith.cmpi eq, %arg2, %c0_i32 : i32
    %1 = arith.extui %0 : i1 to i32
    %c0_i32_0 = arith.constant 0 : i32
    %2 = arith.cmpi ne, %1, %c0_i32_0 : i32
    scf.if %2 {
      %cst_12 = arith.constant 0.000000e+00 : f32
      %17 = vector.broadcast %cst_12 : f32 to vector<32x32xf32>
      %c0_13 = arith.constant 0 : index
      %c0_14 = arith.constant 0 : index
      %18 = vector.load %arg7[%c0_13, %c0_14] : memref<32x32xf32, #tpu.memory_space<vmem>>, vector<32x32xf32>
      tpu.vector_store %arg7[%c0_13, %c0_14], %17 {strides = array<i32>} : memref<32x32xf32, #tpu.memory_space<vmem>>, vector<32x32xf32>,
    } else {
    }
    %c0 = arith.constant 0 : index
    %c0_1 = arith.constant 0 : index
    %3 = vector.load %arg3[%c0, %c0_1] : memref<32x8xbf16, #tpu.memory_space<vmem>>, vector<32x8xbf16>
    %4 = arith.extf %3 : vector<32x8xbf16> to vector<32x8xf32>
    %c0_2 = arith.constant 0 : index
    %c0_3 = arith.constant 0 : index
    %5 = vector.load %arg5[%c0_2, %c0_3] : memref<1x8xf32, #tpu.memory_space<vmem>>, vector<1x8xf32>
    %6 = vector.broadcast %5 : vector<1x8xf32> to vector<32x8xf32>
    %7 = arith.mulf %4, %6 : vector<32x8xf32>
    %8 = arith.truncf %7 : vector<32x8xf32> to vector<32x8xbf16>
    %c0_4 = arith.constant 0 : index
    %c0_5 = arith.constant 0 : index
    %9 = vector.load %arg7[%c0_4, %c0_5] : memref<32x32xf32, #tpu.memory_space<vmem>>, vector<32x32xf32>
    %c0_6 = arith.constant 0 : index
    %c0_7 = arith.constant 0 : index
    %10 = vector.load %arg4[%c0_6, %c0_7] : memref<8x32xbf16, #tpu.memory_space<vmem>>, vector<8x32xbf16>
    %cst = arith.constant dense<0.000000e+00> : vector<32x32xf32>
    %11 = tpu.matmul %8, %10, %cst {dimension_numbers = #tpu.dot_dimension_numbers<[1], [0], [0], [1], [0, 0, 1, 1], [], []>} : vector<32x8xbf16>, vector<8x32xbf16>, vector<32x32xf32> -> vector<32x32xf32>
    %12 = arith.addf %9, %11 : vector<32x32xf32>
    %c0_8 = arith.constant 0 : index
    %c0_9 = arith.constant 0 : index
    %13 = vector.load %arg7[%c0_8, %c0_9] : memref<32x32xf32, #tpu.memory_space<vmem>>, vector<32x32xf32>
    tpu.vector_store %arg7[%c0_8, %c0_9], %12 {strides = array<i32>} : memref<32x32xf32, #tpu.memory_space<vmem>>, vector<32x32xf32>,
    %c0_i32_10 = arith.constant 0 : i32
    %14 = arith.cmpi eq, %arg2, %c0_i32_10 : i32
    %15 = arith.extui %14 : i1 to i32
    %c0_i32_11 = arith.constant 0 : i32
    %16 = arith.cmpi ne, %15, %c0_i32_11 : i32
    scf.if %16 {
      %c0_12 = arith.constant 0 : index
      %c0_13 = arith.constant 0 : index
      %17 = vector.load %arg7[%c0_12, %c0_13] : memref<32x32xf32, #tpu.memory_space<vmem>>, vector<32x32xf32>
      %c0_14 = arith.constant 0 : index
      %c0_15 = arith.constant 0 : index
      %18 = vector.load %arg6[%c0_14, %c0_15] : memref<32x32xf32, #tpu.memory_space<vmem>>, vector<32x32xf32>
      tpu.vector_store %arg6[%c0_14, %c0_15], %17 {strides = array<i32>} : memref<32x32xf32, #tpu.memory_space<vmem>>, vector<32x32xf32>,
    } else {
    }
    return
  }
  func.func @transform_0(%arg0: i32, %arg1: i32, %arg2: i32) -> (i32, i32) {
    %c0_i32 = arith.constant 0 : i32
    return %arg0, %arg2 : i32, i32
  }
  func.func @transform_1(%arg0: i32, %arg1: i32, %arg2: i32) -> (i32, i32) {
    %c0_i32 = arith.constant 0 : i32
    return %arg2, %arg1 : i32, i32
  }
  func.func @transform_2(%arg0: i32, %arg1: i32, %arg2: i32) -> (i32, i32) {
    %c0_i32 = arith.constant 0 : i32
    %c0_i32_0 = arith.constant 0 : i32
    return %c0_i32, %arg2 : i32, i32
  }
  func.func @transform_3(%arg0: i32, %arg1: i32, %arg2: i32) -> (i32, i32) {
    %c0_i32 = arith.constant 0 : i32
    return %arg0, %arg1 : i32, i32
  }
}

module attributes {stable_mosaic.version = 11 : i64} {
  func.func @_svf_lowrank_forward_kernel(%arg0: i32, %arg1: memref<16x32xf32, #tpu.memory_space<vmem>>, %arg2: memref<8x32xbf16, #tpu.memory_space<vmem>>, %arg3: memref<32x8xbf16, #tpu.memory_space<vmem>>, %arg4: memref<1x8xf32, #tpu.memory_space<vmem>>, %arg5: memref<16x32xf32, #tpu.memory_space<vmem>>) attributes {dimension_semantics = [#tpu.dimension_semantics<parallel>], iteration_bounds = array<i64: 1>, scalar_prefetch = 0 : i64, scratch_operands = 0 : i64, tpu.core_type = #tpu.core_type<tc>, window_params = [{transform_indices = @transform_0, window_bounds = array<i64: 16, 32>}, {pipeline_mode = #tpu.pipeline_mode<synchronous>, transform_indices = @transform_1, window_bounds = array<i64: 8, 32>}, {pipeline_mode = #tpu.pipeline_mode<synchronous>, transform_indices = @transform_2, window_bounds = array<i64: 32, 8>}, {pipeline_mode = #tpu.pipeline_mode<synchronous>, transform_indices = @transform_3, window_bounds = array<i64: 1, 8>}, {transform_indices = @transform_4, window_bounds = array<i64: 16, 32>}]} {
    %c0 = arith.constant 0 : index
    %c0_0 = arith.constant 0 : index
    %0 = vector.load %arg1[%c0, %c0_0] : memref<16x32xf32, #tpu.memory_space<vmem>>, vector<16x32xf32>
    %1 = arith.truncf %0 : vector<16x32xf32> to vector<16x32xbf16>
    %c0_1 = arith.constant 0 : index
    %c0_2 = arith.constant 0 : index
    %2 = vector.load %arg2[%c0_1, %c0_2] : memref<8x32xbf16, #tpu.memory_space<vmem>>, vector<8x32xbf16>
    %cst = arith.constant dense<0.000000e+00> : vector<16x8xf32>
    %3 = tpu.matmul %1, %2, %cst {dimension_numbers = #tpu.dot_dimension_numbers<[1], [1], [0], [0], [0, 0, 1, 0], [], []>} : vector<16x32xbf16>, vector<8x32xbf16>, vector<16x8xf32> -> vector<16x8xf32>
    %c0_3 = arith.constant 0 : index
    %c0_4 = arith.constant 0 : index
    %4 = vector.load %arg4[%c0_3, %c0_4] : memref<1x8xf32, #tpu.memory_space<vmem>>, vector<1x8xf32>
    %5 = vector.broadcast %4 : vector<1x8xf32> to vector<16x8xf32>
    %6 = arith.mulf %3, %5 : vector<16x8xf32>
    %7 = arith.truncf %6 : vector<16x8xf32> to vector<16x8xbf16>
    %c0_5 = arith.constant 0 : index
    %c0_6 = arith.constant 0 : index
    %8 = vector.load %arg3[%c0_5, %c0_6] : memref<32x8xbf16, #tpu.memory_space<vmem>>, vector<32x8xbf16>
    %cst_7 = arith.constant dense<0.000000e+00> : vector<16x32xf32>
    %9 = tpu.matmul %7, %8, %cst_7 {dimension_numbers = #tpu.dot_dimension_numbers<[1], [1], [0], [0], [0, 0, 1, 0], [], []>} : vector<16x8xbf16>, vector<32x8xbf16>, vector<16x32xf32> -> vector<16x32xf32>
    %c0_8 = arith.constant 0 : index
    %c0_9 = arith.constant 0 : index
    %10 = vector.load %arg5[%c0_8, %c0_9] : memref<16x32xf32, #tpu.memory_space<vmem>>, vector<16x32xf32>
    tpu.vector_store %arg5[%c0_8, %c0_9], %9 {strides = array<i32>} : memref<16x32xf32, #tpu.memory_space<vmem>>, vector<16x32xf32>,
    return
  }
  func.func @transform_0(%arg0: i32) -> (i32, i32) {
    %c0_i32 = arith.constant 0 : i32
    %c0_i32_0 = arith.constant 0 : i32
    return %arg0, %c0_i32 : i32, i32
  }
  func.func @transform_1(%arg0: i32) -> (i32, i32) {
    %c0_i32 = arith.constant 0 : i32
    %c0_i32_0 = arith.constant 0 : i32
    %c0_i32_1 = arith.constant 0 : i32
    return %c0_i32, %c0_i32_0 : i32, i32
  }
  func.func @transform_2(%arg0: i32) -> (i32, i32) {
    %c0_i32 = arith.constant 0 : i32
    %c0_i32_0 = arith.constant 0 : i32
    %c0_i32_1 = arith.constant 0 : i32
    return %c0_i32, %c0_i32_0 : i32, i32
  }
  func.func @transform_3(%arg0: i32) -> (i32, i32) {
    %c0_i32 = arith.constant 0 : i32
    %c0_i32_0 = arith.constant 0 : i32
    %c0_i32_1 = arith.constant 0 : i32
    return %c0_i32, %c0_i32_0 : i32, i32
  }
  func.func @transform_4(%arg0: i32) -> (i32, i32) {
    %c0_i32 = arith.constant 0 : i32
    %c0_i32_0 = arith.constant 0 : i32
    return %arg0, %c0_i32 : i32, i32
  }
}

</mosaic_0001>

<llo_original>
// kernel: svf_forward.2
$region0: #{svf_forward.2}
  #allocation0 [shape = 'u32[]', space=smem, size = 0x4, offset = 0x4, fixed_abs, tag = 'smem constant byte address 0x4 - core index']
  #allocation1 [shape = 'u32[72,128]{1,0:T(1,128)}', space=vmem, size = 0x9000, scoped, tag = 'internal scratch']
  #allocation2 [shape = 'f32[32,32]{1,0:T(8,128)}', space=vmem, size = 0x4000, scoped, tag = 'scratch operand']
  %s0 = inlined_call_operand.vmem [shape: bf16[32,8], index: 0, kind: input, shape index: {}]
  %s1 = inlined_call_operand.vmem [shape: bf16[8,32], index: 1, kind: input, shape index: {}]
  %s2 = inlined_call_operand.vmem [shape: f32[1,8], index: 2, kind: input, shape index: {}]
  %s3 = inlined_call_operand.hbm [shape: f32[32,32], index: 3, kind: output, shape index: {}]
  %s4 = sld [smem:[#allocation0]]
  $region30: #{svf_forward.2} parent=0
    _
  %s6 = ssub.s32 1, %s4
  %s7 = scalar_select 0, %s6, %s4
  $region1: #{svf_forward.2} parent=0
    #allocation3 [shape = 'u8[16384]{0}', space=vmem, size = 0x4000, scoped, tag = 'output window, operand 0, single buffered']
    #allocation4 [shape = 's32[1]{0}', space=sflag, size = 0x4, scoped, tag = 'scoped memory for svf_forward.2']
    %8 = vsyncpa [#allocation4], 0
    // Predicated region
    $region2: #{svf_forward.2} parent=1 // pred_check
      _
    $region3: #{svf_forward.2} parent=1 // pred_check_branch
      %10 = sbr.rel (0) target = $region5
    $region4: #{svf_forward.2} parent=1 // pred_region
      _
    $region5: #{svf_forward.2} parent=1 // pred_fallthru
      _
    // Predicated region
    $region6: #{svf_forward.2} parent=1 // pred_check
      _
    $region7: #{svf_forward.2} parent=1 // pred_check_branch
      %12 = sbr.rel (0) target = $region9
    $region8: #{svf_forward.2} parent=1 // pred_region
      _
    $region9: #{svf_forward.2} parent=1 // pred_fallthru
      _
    // Predicated region
    $region10: #{svf_forward.2} parent=1 // pred_check
      _
    $region11: #{svf_forward.2} parent=1 // pred_check_branch
      %14 = sbr.rel (0) target = $region13
    $region12: #{svf_forward.2} parent=1 // pred_region
      _
    $region13: #{svf_forward.2} parent=1 // pred_fallthru
      _
    %p16 = scmp.eq.s32.totalorder 0, 0
    // Predicated region
    $region14: #{svf_forward.2} parent=1 // pred_check
      %p17 = pneg %p16
    $region15: #{svf_forward.2} parent=1 // pred_check_branch
      %19 = sbr.rel (%p17) target = $region17
    $region16: #{svf_forward.2} parent=1 // pred_region
      %vm20 = vcmask 261120
      %21 = vst.msk [vmem:[#allocation2] sm:$0xff] %vm20, 0.0
      %22 = vst.msk [vmem:[#allocation2 + $0x8] sm:$0xff] %vm20, 0.0
      %23 = vst.msk [vmem:[#allocation2 + $0x10] sm:$0xff] %vm20, 0.0
      %24 = vst.msk [vmem:[#allocation2 + $0x18] sm:$0xff] %vm20, 0.0
    $region17: #{svf_forward.2} parent=1 // pred_fallthru
      _
    %v25 = vld [vmem:[%s0] sm:$0xf]
    %v26 = vld [vmem:[%s0 + $0x4] sm:$0xf]
    %v27 = vld [vmem:[%s0 + $0x8] sm:$0xf]
    %v28 = vld [vmem:[%s0 + $0xc] sm:$0xf]
    %v29 = vunpack.c.l.bf16 %v25
    %v30 = vunpack.c.l.bf16 %v26
    %v31 = vunpack.c.l.bf16 %v27
    %v32 = vunpack.c.l.bf16 %v28
    %v33 = vld [vmem:[%s2] sm:$0x1]
    %v35 = vperm.slane %v33, 0
    %v37 = vmul.f32 %v29, %v35
    %v38 = vmul.f32 %v30, %v35
    %v39 = vmul.f32 %v31, %v35
    %v40 = vmul.f32 %v32, %v35
    %v41 = vpack.c.bf16 %v38, %v37
    %v42 = vpack.c.bf16 %v40, %v39
    %v43 = vld [vmem:[#allocation2] sm:$0xff]
    %v44 = vld [vmem:[#allocation2 + $0x8] sm:$0xff]
    %v45 = vld [vmem:[#allocation2 + $0x10] sm:$0xff]
    %v46 = vld [vmem:[#allocation2 + $0x18] sm:$0xff]
    %v47 = vld [vmem:[%s1] sm:$0xf]
    %vm48 = vcmask 64512
    %v50 = vsel %vm48, %v41, 0
    %v53 = vsel %vm48, %v42, 0
    %vm55 = vcmask 1043456
    %v57 = vsel %vm55, %v47, 0
    %59 = vmatpush.bf16.msra.mxu0 0
    %60 = vmatpush.bf16.msra.mxu0 0
    %61 = vmatpush.bf16.msra.mxu0 0
    %62 = vmatpush.bf16.msra.mxu0 0
    %63 = vmatpush.bf16.msra.mxu0 0
    %64 = vmatpush.bf16.msra.mxu0 0
    %65 = vmatpush.bf16.msra.mxu0 0
    %66 = vmatpush.bf16.msra.mxu0 %v57
    %67 = vmatmul.bf16.gmra.mxu0 %v50
    %v68 = vpop.f32.mrf.mxu0
    %v69 = vadd.f32 0.0, %v68
    %v70 = vpop.f32.mrf.mxu0
    %v71 = vadd.f32 0.0, %v70
    %72 = vmatmul.bf16.gmra.mxu0 %v53
    %v73 = vpop.f32.mrf.mxu0
    %v74 = vadd.f32 0.0, %v73
    %v75 = vpop.f32.mrf.mxu0
    %v76 = vadd.f32 0.0, %v75
    %77 = vdwg.mxu0
    %v78 = vadd.f32 %v43, %v69
    %v79 = vadd.f32 %v44, %v71
    %v80 = vadd.f32 %v45, %v74
    %v81 = vadd.f32 %v46, %v76
    %vm82 = vcmask 261120
    %83 = vst.msk [vmem:[#allocation2] sm:$0xff] %vm82, %v78
    %84 = vst.msk [vmem:[#allocation2 + $0x8] sm:$0xff] %vm82, %v79
    %85 = vst.msk [vmem:[#allocation2 + $0x10] sm:$0xff] %vm82, %v80
    %86 = vst.msk [vmem:[#allocation2 + $0x18] sm:$0xff] %vm82, %v81
    // Predicated region
    $region18: #{svf_forward.2} parent=1 // pred_check
      %p87 = pneg %p16
    $region19: #{svf_forward.2} parent=1 // pred_check_branch
      %89 = sbr.rel (%p87) target = $region21
    $region20: #{svf_forward.2} parent=1 // pred_region
      %v90 = vld [vmem:[#allocation2] sm:$0xff]
      %v91 = vld [vmem:[#allocation2 + $0x8] sm:$0xff]
      %v92 = vld [vmem:[#allocation2 + $0x10] sm:$0xff]
      %v93 = vld [vmem:[#allocation2 + $0x18] sm:$0xff]
      %94 = vst.msk [vmem:[#allocation3] sm:$0xff] %vm82, %v90
      %95 = vst.msk [vmem:[#allocation3 + $0x8] sm:$0xff] %vm82, %v91
      %96 = vst.msk [vmem:[#allocation3 + $0x10] sm:$0xff] %vm82, %v92
      %97 = vst.msk [vmem:[#allocation3 + $0x18] sm:$0xff] %vm82, %v93
    $region21: #{svf_forward.2} parent=1 // pred_fallthru
      _
    // Predicated region
    $region22: #{svf_forward.2} parent=1 // pred_check
      _
    $region23: #{svf_forward.2} parent=1 // pred_check_branch
      %99 = sbr.rel (0) target = $region25
    $region24: #{svf_forward.2} parent=1 // pred_region
      %101 = vsyncadd [#allocation4], 0
      %s102 = sshll.u32 [#allocation3], 4
      %s103 = int_to_ptr.vmem [resolvable:$true] %s102
      %s104 = sshll.u32 %s3, 4
      %s105 = int_to_ptr.hbm [resolvable:$true] %s104
      %110 = dma.vmem_to_hbm [thread:$0]  %s103, 512, %s105, [#allocation4], 128, 128, 8
    $region25: #{svf_forward.2} parent=1 // pred_fallthru
      _
    // Predicated region
    $region26: #{svf_forward.2} parent=1 // pred_check
      _
    $region27: #{svf_forward.2} parent=1 // pred_check_branch
      %112 = sbr.rel (0) target = $region29
    $region28: #{svf_forward.2} parent=1 // pred_region
      %114 = dma.done [#allocation4], 512
    $region29: #{svf_forward.2} parent=1 // pred_fallthru
      _
    %115 = vsyncpa [#allocation4], 1

// kernel: svf_forward.3
$region0: #{svf_forward.3}
  #allocation0 [shape = 'u32[]', space=smem, size = 0x4, offset = 0x4, fixed_abs, tag = 'smem constant byte address 0x4 - core index']
  #allocation1 [shape = 'u32[72,128]{1,0:T(1,128)}', space=vmem, size = 0x9000, scoped, tag = 'internal scratch']
  %s0 = inlined_call_operand.vmem [shape: f32[16,32], index: 0, kind: input, shape index: {}]
  %s1 = inlined_call_operand.vmem [shape: bf16[8,32], index: 1, kind: input, shape index: {}]
  %s2 = inlined_call_operand.vmem [shape: bf16[32,8], index: 2, kind: input, shape index: {}]
  %s3 = inlined_call_operand.vmem [shape: f32[1,8], index: 3, kind: input, shape index: {}]
  %s4 = inlined_call_operand.hbm [shape: f32[16,32], index: 4, kind: output, shape index: {}]
  %s5 = sld [smem:[#allocation0]]
  $region26: #{svf_forward.3} parent=0
    _
  %s7 = ssub.s32 1, %s5
  %s8 = scalar_select 0, %s7, %s5
  $region1: #{svf_forward.3} parent=0
    #allocation2 [shape = 'u8[8192]{0}', space=vmem, size = 0x2000, scoped, tag = 'output window, operand 0, single buffered']
    #allocation3 [shape = 's32[1]{0}', space=sflag, size = 0x4, scoped, tag = 'scoped memory for svf_forward.3']
    %9 = vsyncpa [#allocation3], 0
    // Predicated region
    $region2: #{svf_forward.3} parent=1 // pred_check
      _
    $region3: #{svf_forward.3} parent=1 // pred_check_branch
      %11 = sbr.rel (0) target = $region5
    $region4: #{svf_forward.3} parent=1 // pred_region
      _
    $region5: #{svf_forward.3} parent=1 // pred_fallthru
      _
    // Predicated region
    $region6: #{svf_forward.3} parent=1 // pred_check
      _
    $region7: #{svf_forward.3} parent=1 // pred_check_branch
      %13 = sbr.rel (0) target = $region9
    $region8: #{svf_forward.3} parent=1 // pred_region
      _
    $region9: #{svf_forward.3} parent=1 // pred_fallthru
      _
    // Predicated region
    $region10: #{svf_forward.3} parent=1 // pred_check
      _
    $region11: #{svf_forward.3} parent=1 // pred_check_branch
      %15 = sbr.rel (0) target = $region13
    $region12: #{svf_forward.3} parent=1 // pred_region
      _
    $region13: #{svf_forward.3} parent=1 // pred_fallthru
      _
    // Predicated region
    $region14: #{svf_forward.3} parent=1 // pred_check
      _
    $region15: #{svf_forward.3} parent=1 // pred_check_branch
      %17 = sbr.rel (0) target = $region17
    $region16: #{svf_forward.3} parent=1 // pred_region
      _
    $region17: #{svf_forward.3} parent=1 // pred_fallthru
      _
    %v19 = vld [vmem:[%s0] sm:$0xff]
    %v20 = vld [vmem:[%s0 + $0x8] sm:$0xff]
    %v21 = vpack.c.bf16 %v20, %v19
    %v22 = vld [vmem:[%s1] sm:$0xf]
    %vm23 = vcmask 261120
    %v25 = vsel %vm23, %v21, 0
    %v28 = vsel %vm23, %v22, 0
    %30 = vmatpush.bf16.xpose.msra.mxu0 0
    %31 = vmatpush.bf16.xpose.msra.mxu0 0
    %32 = vmatpush.bf16.xpose.msra.mxu0 0
    %33 = vmatpush.bf16.xpose.msra.mxu0 0
    %34 = vmatpush.bf16.xpose.msra.mxu0 0
    %35 = vmatpush.bf16.xpose.msra.mxu0 0
    %36 = vmatpush.bf16.xpose.msra.mxu0 0
    %37 = vmatpush.bf16.xpose.msra.mxu0 %v28
    %38 = vmatmul.bf16.gmra.mxu0 %v25
    %v39 = vpop.f32.mrf.mxu0
    %v40 = vadd.f32 0.0, %v39
    %v41 = vpop.f32.mrf.mxu0
    %v42 = vadd.f32 0.0, %v41
    %43 = vdwg.mxu0
    %v44 = vld [vmem:[%s3] sm:$0x1]
    %v46 = vperm.slane %v44, 0
    %v48 = vmul.f32 %v40, %v46
    %v49 = vmul.f32 %v42, %v46
    %v50 = vpack.c.bf16 %v49, %v48
    %v51 = vld [vmem:[%s2] sm:$0xf]
    %v52 = vld [vmem:[%s2 + $0x4] sm:$0xf]
    %v53 = vld [vmem:[%s2 + $0x8] sm:$0xf]
    %v54 = vld [vmem:[%s2 + $0xc] sm:$0xf]
    %v59 = vunpack.c.l.b16 %v51
    %v60 = vunpack.c.l.b16 %v52
    %v61 = vunpack.c.l.b16 %v53
    %v62 = vunpack.c.l.b16 %v54
    %v63 = vpack.c.b16 %v60, %v59
    %v64 = vpack.c.b16 %v62, %v61
    %vm65 = vcmask 64512
    %v67 = vsel %vm65, %v50, 0
    %v70 = vsel %vm65, %v63, 0
    %v73 = vsel %vm65, %v64, 0
    %75 = vmatpush.bf16.xpose.msra.mxu0 0
    %76 = vmatpush.bf16.xpose.msra.mxu0 0
    %77 = vmatpush.bf16.xpose.msra.mxu0 0
    %78 = vmatpush.bf16.xpose.msra.mxu0 0
    %79 = vmatpush.bf16.xpose.msra.mxu0 0
    %80 = vmatpush.bf16.xpose.msra.mxu0 0
    %81 = vmatpush.bf16.xpose.msra.mxu0 %v73
    %82 = vmatpush.bf16.xpose.msra.mxu0 %v70
    %83 = vmatmul.bf16.gmra.mxu0 %v67
    %v84 = vpop.f32.mrf.mxu0
    %v85 = vadd.f32 0.0, %v84
    %v86 = vpop.f32.mrf.mxu0
    %v87 = vadd.f32 0.0, %v86
    %88 = vdwg.mxu0
    %89 = vst.msk [vmem:[#allocation2] sm:$0xff] %vm23, %v85
    %90 = vst.msk [vmem:[#allocation2 + $0x8] sm:$0xff] %vm23, %v87
    // Predicated region
    $region18: #{svf_forward.3} parent=1 // pred_check
      _
    $region19: #{svf_forward.3} parent=1 // pred_check_branch
      %92 = sbr.rel (0) target = $region21
    $region20: #{svf_forward.3} parent=1 // pred_region
      %94 = vsyncadd [#allocation3], 0
      %s95 = sshll.u32 [#allocation2], 4
      %s96 = int_to_ptr.vmem [resolvable:$true] %s95
      %s97 = sshll.u32 %s4, 4
      %s98 = int_to_ptr.hbm [resolvable:$true] %s97
      %103 = dma.vmem_to_hbm [thread:$0]  %s96, 256, %s98, [#allocation3], 128, 128, 8
    $region21: #{svf_forward.3} parent=1 // pred_fallthru
      _
    // Predicated region
    $region22: #{svf_forward.3} parent=1 // pred_check
      _
    $region23: #{svf_forward.3} parent=1 // pred_check_branch
      %105 = sbr.rel (0) target = $region25
    $region24: #{svf_forward.3} parent=1 // pred_region
      %107 = dma.done [#allocation3], 256
    $region25: #{svf_forward.3} parent=1 // pred_fallthru
      _
    %108 = vsyncpa [#allocation3], 1

</llo_original>
